<compile_context>
chip_gen: v6e
topology: v6e:2x2x1
jax: 0.10.0
libtpu: 0.0.40
codegen_flags: <defaults>
</compile_context>

<pallas_src>
import jax
import jax.numpy as jnp
from jax.experimental import pallas as pl
from jax.experimental.pallas import tpu as pltpu


def _round_up(x, m):
    return -(-x // m) * m


def _vmem_capacity_bytes():
    try:
        info = pltpu.get_tpu_info()
        for attr in ("vmem_capacity_bytes", "vmem_size_bytes", "vmem_bytes"):
            v = getattr(info, attr, None)
            if v:
                return int(v)
    except Exception:
        pass
    return 64 * 1024 * 1024   # conservative (v7x-sized) fallback


def _make_pcnn_kernel(TB, L, nF, R, R_pad, elem_dtype):
    def kernel(x_ref, w_ref, bias_ref, thresh_ref, cls_w_ref, cls_b_ref,
               labels_ref, out_ref):
        # ---- conv for ALL filters: one im2col matmul, K = k_max*D.
        acc = jnp.dot(x_ref[...], w_ref[...],
                      preferred_element_type=jnp.float32)           # (rows, nF)
        h = jnp.tanh(acc + bias_ref[...])                            # (rows, nF) f32
        h = h.reshape(TB, L, nF).astype(elem_dtype)                  # (TB, L, nF)

        # ---- validity mask built once per (L, nF), broadcast over TB.
        pos_l = jax.lax.broadcasted_iota(jnp.int32, (L, nF), 0)      # (L, nF)
        valid = pos_l < thresh_ref[...]                              # (L, nF)
        h = jnp.where(valid[None, :, :], h, -2.0)                    # tanh >= -1 > -2
        feat = jnp.max(h, axis=1)                                    # (TB, nF)

        # ---- classifier (lane-dense, padded to R_pad classes; pad bias -1e30).
        logits = jnp.dot(feat.astype(jnp.bfloat16), cls_w_ref[...],
                         preferred_element_type=jnp.float32) + cls_b_ref[...]

        # ---- per-sample cross-entropy + argmax folded into the logits block.
        labels = labels_ref[...]                                     # (TB, 1) int32
        col = jax.lax.broadcasted_iota(jnp.int32, (TB, R_pad), 1)
        m = jnp.max(logits, axis=-1, keepdims=True)                  # (TB, 1)
        lse = jnp.log(jnp.sum(jnp.exp(logits - m), axis=-1,
                              keepdims=True)) + m                    # (TB, 1)
        true_logit = jnp.sum(jnp.where(col == labels, logits, 0.0),
                             axis=-1, keepdims=True)                 # (TB, 1)
        loss = lse - true_logit                                      # per-sample CE
        # first index achieving the max (matches torch.max tie behavior)
        pred = jnp.min(jnp.where(logits == m, col, R_pad),
                       axis=-1, keepdims=True).astype(jnp.float32)   # (TB, 1)

        out = jnp.where(col == R, loss, logits)                      # col R  = loss
        out = jnp.where(col == R + 1, pred, out)                     # col R+1 = pred
        out_ref[...] = out                                           # (TB, R_pad)

    return kernel


def pcnn_forward(params, token_ids, pos1_feature, pos2_feature, labels, filters):
    # Embedding lookups + concat are plain-JAX glue.
    # TODO(synk): fuse the three gathers into the kernel (scalar-prefetched ids
    # + manual-DMA gather on the embedding tables) to remove the extra HBM
    # round-trip of x for production configs.
    word = jnp.take(params["word_emb"], token_ids, axis=0)
    p1 = jnp.take(params["pos1_emb"], pos1_feature, axis=0)
    p2 = jnp.take(params["pos2_emb"], pos2_feature, axis=0)
    x = jnp.concatenate([word, p1, p2], axis=2)                      # (B, L, D) f32
    # nn.Dropout -> identity (eval).  TODO(synk): stochastic dropout for train.

    B, L, D = x.shape
    F = params["conv_w"][0].shape[2]
    R = params["cls_b"].shape[1]
    nF = len(filters) * F
    k_max = max(filters)
    kD = k_max * D
    R_pad = _round_up(max(R + 2, 128), 128)

    # ---- generation-aware tiling -------------------------------------------
    vmem_cap = _vmem_capacity_bytes()
    nF_lanes = _round_up(nF, 128)
    kD_lanes = _round_up(kD, 128)

    def tile_vmem_bytes(tb):
        rows = tb * L
        return (2 * rows * kD_lanes * 2           # double-buffered bf16 im2col x
                + 3 * rows * nF_lanes * 4         # live f32 conv temporaries
                + 2 * tb * R_pad * 4)             # double-buffered output

    fit = [t for t in (64, 32, 16, 8) if tile_vmem_bytes(t) <= vmem_cap // 2]
    TB = fit[0] if fit else 8
    # Don't over-pad tiny batches, but always keep >= 2 grid steps
    # (input/output pipelining and both TensorCores on v7x).
    TB = max(8, min(TB, _round_up(-(-B // 2), 8)))
    num_tiles = max(2, -(-B // TB))
    B_pad = num_tiles * TB
    rows = TB * L

    # bf16 post-tanh elementwise only where the VPU has a bf16 path (v6e/v7x).
    kind = jax.devices()[0].device_kind.lower()
    elem_dtype = (jnp.bfloat16
                  if any(t in kind for t in ("v6", "v7", "tpu7"))
                  else jnp.float32)

    # ---- batch pad + im2col LHS --------------------------------------------
    if B_pad != B:
        x = jnp.pad(x, ((0, B_pad - B), (0, 0), (0, 0)))
        labels_p = jnp.pad(labels, (0, B_pad - B))
    else:
        labels_p = labels
    x_bf = x.astype(jnp.bfloat16)
    # tap-j rows shifted up within each sentence; wrap-around rows only feed
    # (position, tap) pairs that are zero-weighted or masked in the kernel.
    x_cat = jnp.concatenate([jnp.roll(x_bf, -j, axis=1) for j in range(k_max)],
                            axis=-1)                                 # (B_pad, L, kD)
    x_flat = x_cat.reshape(B_pad * L, kD)

    # ---- fold parameters -----------------------------------------------------
    # combined conv weight: filter i in lanes [i*F,(i+1)*F), zero rows for taps
    # j >= k_i (they never contribute at valid positions).
    w_all = jnp.zeros((k_max, D, nF), jnp.float32)
    for i, k in enumerate(filters):
        w_all = w_all.at[:k, :, i * F:(i + 1) * F].set(params["conv_w"][i])
    w_flat = w_all.reshape(kD, nF).astype(jnp.bfloat16)
    bias_all = jnp.concatenate(params["conv_b"], axis=1)             # (1, nF) f32
    # per-output-column valid length: position p valid for filter i iff p < L-k_i+1
    thresh = jnp.concatenate(
        [jnp.full((1, F), L - k + 1, jnp.int32) for k in filters], axis=1)
    # lane-dense classifier: pad classes to R_pad; padded bias = -1e30.
    cls_w_pad = jnp.zeros((nF, R_pad), jnp.float32).at[:, :R].set(params["cls_w"])
    cls_w_pad = cls_w_pad.astype(jnp.bfloat16)
    cls_b_pad = jnp.full((1, R_pad), -1e30, jnp.float32).at[:, :R].set(params["cls_b"])

    labels2d = labels_p.reshape(B_pad, 1).astype(jnp.int32)

    kernel = _make_pcnn_kernel(TB, L, nF, R, R_pad, elem_dtype)

    out = pl.pallas_call(
        kernel,
        grid=(num_tiles,),
        in_specs=[
            pl.BlockSpec((rows, kD), lambda i: (i, 0)),              # im2col x
            pl.BlockSpec((kD, nF), lambda i: (0, 0)),                # conv weight
            pl.BlockSpec((1, nF), lambda i: (0, 0)),                 # conv bias
            pl.BlockSpec((1, nF), lambda i: (0, 0)),                 # valid lengths
            pl.BlockSpec((nF, R_pad), lambda i: (0, 0)),             # cls weight
            pl.BlockSpec((1, R_pad), lambda i: (0, 0)),              # cls bias
            pl.BlockSpec((TB, 1), lambda i: (i, 0)),                 # labels
        ],
        out_specs=pl.BlockSpec((TB, R_pad), lambda i: (i, 0)),       # fused output
        out_shape=jax.ShapeDtypeStruct((B_pad, R_pad), jnp.float32),
        compiler_params=pltpu.CompilerParams(
            dimension_semantics=("parallel",),
            vmem_limit_bytes=min(96 * 1024 * 1024, (vmem_cap * 3) // 4)),
    )(x_flat, w_flat, bias_all, thresh, cls_w_pad, cls_b_pad, labels2d)

    logits = out[:B, :R]
    loss = jnp.mean(out[:B, R])                                      # CE mean reduction
    pred = out[:B, R + 1].astype(jnp.int32)
    return loss, pred, logits


def _reference(params, token_ids, pos1_feature, pos2_feature, labels, filters):
    """Pure-JAX f32 reference mirroring the PyTorch forward."""
    word = params["word_emb"][token_ids]
    p1 = params["pos1_emb"][pos1_feature]
    p2 = params["pos2_emb"][pos2_feature]
    x = jnp.concatenate([word, p1, p2], axis=2)                      # (B, L, D)
    B, L, _ = x.shape
    pooled = []
    for (w, bi), k in zip(zip(params["conv_w"], params["conv_b"]), filters):
        l_out = L - k + 1
        out = sum(jnp.einsum("bld,df->blf", x[:, j:j + l_out, :], w[j])
                  for j in range(k)) + bi
        pooled.append(jnp.tanh(out).max(axis=1))                     # (B, F)
    feat = jnp.concatenate(pooled, axis=1)
    logits = feat @ params["cls_w"] + params["cls_b"]
    lse = jax.nn.logsumexp(logits, axis=-1)
    loss = jnp.mean(lse - logits[jnp.arange(B), labels])
    pred = jnp.argmax(logits, axis=-1)
    return loss, pred, logits


if __name__ == "__main__":
    # Small synthetic config (mirrors NormalConfig fields).
    vocab_size = 50
    word_embedding_dim = 16
    position_embedding_dim = 8
    pos_dis_limit = 10
    pos_vocab = pos_dis_limit * 2 + 3
    filter_num = 8
    filters = (2, 3, 4)
    relation_labels = 5
    B, L = 2, 16
    feature_dim = word_embedding_dim + 2 * position_embedding_dim
    filter_dim = filter_num * len(filters)

    key = jax.random.PRNGKey(0)
    ks = jax.random.split(key, 16)

    params = {
        "word_emb": 0.1 * jax.random.normal(ks[0], (vocab_size, word_embedding_dim), jnp.float32),
        "pos1_emb": 0.1 * jax.random.normal(ks[1], (pos_vocab, position_embedding_dim), jnp.float32),
        "pos2_emb": 0.1 * jax.random.normal(ks[2], (pos_vocab, position_embedding_dim), jnp.float32),
        # conv weights stored directly as [k, D, F] (== PyTorch [F,1,k,D] transposed)
        "conv_w": [0.1 * jax.random.normal(ks[3 + i], (k, feature_dim, filter_num), jnp.float32)
                   for i, k in enumerate(filters)],
        "conv_b": [0.1 * jax.random.normal(ks[6 + i], (1, filter_num), jnp.float32)
                   for i in range(len(filters))],
        # classifier weight stored as [filter_dim, R] (== PyTorch Linear weight.T)
        "cls_w": 0.1 * jax.random.normal(ks[9], (filter_dim, relation_labels), jnp.float32),
        "cls_b": 0.1 * jax.random.normal(ks[10], (1, relation_labels), jnp.float32),
    }

    token_ids = jax.random.randint(ks[11], (B, L), 0, vocab_size, jnp.int32)
    pos1_feature = jax.random.randint(ks[12], (B, L), 0, pos_vocab, jnp.int32)
    pos2_feature = jax.random.randint(ks[13], (B, L), 0, pos_vocab, jnp.int32)
    labels = jax.random.randint(ks[14], (B,), 0, relation_labels, jnp.int32)

    loss, pred, logits = pcnn_forward(params, token_ids, pos1_feature,
                                      pos2_feature, labels, filters)
    jax.block_until_ready((loss, pred, logits))

    ref_loss, ref_pred, ref_logits = _reference(params, token_ids, pos1_feature,
                                                pos2_feature, labels, filters)
    assert jnp.allclose(logits, ref_logits, atol=2e-2), (logits, ref_logits)
    assert jnp.allclose(loss, ref_loss, atol=2e-2), (loss, ref_loss)
    assert jnp.array_equal(pred, ref_pred), (pred, ref_pred)

    print("KERNEL_OK")
</pallas_src>

<mosaic_0001>
module attributes {stable_mosaic.version = 11 : i64} {
  func.func @kernel(%arg0: i32, %arg1: memref<128x128xbf16, #tpu.memory_space<vmem>>, %arg2: memref<128x24xbf16, #tpu.memory_space<vmem>>, %arg3: memref<1x24xf32, #tpu.memory_space<vmem>>, %arg4: memref<1x24xi32, #tpu.memory_space<vmem>>, %arg5: memref<24x128xbf16, #tpu.memory_space<vmem>>, %arg6: memref<1x128xf32, #tpu.memory_space<vmem>>, %arg7: memref<8x1xi32, #tpu.memory_space<vmem>>, %arg8: memref<8x128xf32, #tpu.memory_space<vmem>>) attributes {dimension_semantics = [#tpu.dimension_semantics<parallel>], iteration_bounds = array<i64: 2>, scalar_prefetch = 0 : i64, scratch_operands = 0 : i64, tpu.core_type = #tpu.core_type<tc>, window_params = [{transform_indices = @transform_0, window_bounds = array<i64: 128, 128>}, {pipeline_mode = #tpu.pipeline_mode<synchronous>, transform_indices = @transform_1, window_bounds = array<i64: 128, 24>}, {pipeline_mode = #tpu.pipeline_mode<synchronous>, transform_indices = @transform_2, window_bounds = array<i64: 1, 24>}, {pipeline_mode = #tpu.pipeline_mode<synchronous>, transform_indices = @transform_3, window_bounds = array<i64: 1, 24>}, {pipeline_mode = #tpu.pipeline_mode<synchronous>, transform_indices = @transform_4, window_bounds = array<i64: 24, 128>}, {pipeline_mode = #tpu.pipeline_mode<synchronous>, transform_indices = @transform_5, window_bounds = array<i64: 1, 128>}, {transform_indices = @transform_6, window_bounds = array<i64: 8, 1>}, {transform_indices = @transform_7, window_bounds = array<i64: 8, 128>}]} {
    %c0 = arith.constant 0 : index
    %c0_0 = arith.constant 0 : index
    %0 = vector.load %arg1[%c0, %c0_0] : memref<128x128xbf16, #tpu.memory_space<vmem>>, vector<128x128xbf16>
    %c0_1 = arith.constant 0 : index
    %c0_2 = arith.constant 0 : index
    %1 = vector.load %arg2[%c0_1, %c0_2] : memref<128x24xbf16, #tpu.memory_space<vmem>>, vector<128x24xbf16>
    %cst = arith.constant dense<0.000000e+00> : vector<128x24xf32>
    %2 = tpu.matmul %0, %1, %cst {dimension_numbers = #tpu.dot_dimension_numbers<[1], [0], [0], [1], [0, 0, 1, 1], [], []>} : vector<128x128xbf16>, vector<128x24xbf16>, vector<128x24xf32> -> vector<128x24xf32>
    %c0_3 = arith.constant 0 : index
    %c0_4 = arith.constant 0 : index
    %3 = vector.load %arg3[%c0_3, %c0_4] : memref<1x24xf32, #tpu.memory_space<vmem>>, vector<1x24xf32>
    %4 = vector.broadcast %3 : vector<1x24xf32> to vector<128x24xf32>
    %5 = arith.addf %2, %4 : vector<128x24xf32>
    %6 = math.tanh %5 : vector<128x24xf32>
    %7 = vector.shape_cast %6 : vector<128x24xf32> to vector<8x16x24xf32>
    %8 = tpu.iota {dimensions = array<i32: 0>} : vector<16x24xi32>
    %c0_5 = arith.constant 0 : index
    %c0_6 = arith.constant 0 : index
    %9 = vector.load %arg4[%c0_5, %c0_6] : memref<1x24xi32, #tpu.memory_space<vmem>>, vector<1x24xi32>
    %10 = vector.broadcast %9 : vector<1x24xi32> to vector<16x24xi32>
    %11 = arith.cmpi slt, %8, %10 : vector<16x24xi32>
    %12 = vector.shape_cast %11 : vector<16x24xi1> to vector<1x16x24xi1>
    %cst_7 = arith.constant -2.000000e+00 : f32
    %13 = vector.shape_cast %12 : vector<1x16x24xi1> to vector<1x16x24xi1>
    %14 = vector.broadcast %13 : vector<1x16x24xi1> to vector<8x16x24xi1>
    %15 = vector.broadcast %cst_7 : f32 to vector<8x16x24xf32>
    %16 = arith.select %14, %7, %15 : vector<8x16x24xi1>, vector<8x16x24xf32>
    %cst_8 = arith.constant dense<0xFF800000> : vector<8x24xf32>
    %17 = vector.multi_reduction <maximumf>, %16, %cst_8 [1] : vector<8x16x24xf32> to vector<8x24xf32>
    %18 = arith.truncf %17 : vector<8x24xf32> to vector<8x24xbf16>
    %c0_9 = arith.constant 0 : index
    %c0_10 = arith.constant 0 : index
    %19 = vector.load %arg5[%c0_9, %c0_10] : memref<24x128xbf16, #tpu.memory_space<vmem>>, vector<24x128xbf16>
    %cst_11 = arith.constant dense<0.000000e+00> : vector<8x128xf32>
    %20 = tpu.matmul %18, %19, %cst_11 {dimension_numbers = #tpu.dot_dimension_numbers<[1], [0], [0], [1], [0, 0, 1, 1], [], []>} : vector<8x24xbf16>, vector<24x128xbf16>, vector<8x128xf32> -> vector<8x128xf32>
    %c0_12 = arith.constant 0 : index
    %c0_13 = arith.constant 0 : index
    %21 = vector.load %arg6[%c0_12, %c0_13] : memref<1x128xf32, #tpu.memory_space<vmem>>, vector<1x128xf32>
    %22 = vector.broadcast %21 : vector<1x128xf32> to vector<8x128xf32>
    %23 = arith.addf %20, %22 : vector<8x128xf32>
    %c0_14 = arith.constant 0 : index
    %c0_15 = arith.constant 0 : index
    %24 = vector.load %arg7[%c0_14, %c0_15] : memref<8x1xi32, #tpu.memory_space<vmem>>, vector<8x1xi32>
    %25 = tpu.iota {dimensions = array<i32: 1>} : vector<8x128xi32>
    %cst_16 = arith.constant dense<0xFF800000> : vector<8xf32>
    %26 = vector.multi_reduction <maximumf>, %23, %cst_16 [1] : vector<8x128xf32> to vector<8xf32>
    %27 = vector.shape_cast %26 : vector<8xf32> to vector<8x1xf32>
    %28 = vector.broadcast %27 : vector<8x1xf32> to vector<8x128xf32>
    %29 = arith.subf %23, %28 : vector<8x128xf32>
    %30 = math.exp %29 : vector<8x128xf32>
    %cst_17 = arith.constant dense<0.000000e+00> : vector<8xf32>
    %31 = vector.multi_reduction <add>, %30, %cst_17 [1] : vector<8x128xf32> to vector<8xf32>
    %32 = vector.shape_cast %31 : vector<8xf32> to vector<8x1xf32>
    %33 = math.log %32 : vector<8x1xf32>
    %34 = arith.addf %33, %27 : vector<8x1xf32>
    %35 = vector.broadcast %24 : vector<8x1xi32> to vector<8x128xi32>
    %36 = arith.cmpi eq, %25, %35 : vector<8x128xi32>
    %cst_18 = arith.constant 0.000000e+00 : f32
    %37 = vector.broadcast %cst_18 : f32 to vector<8x128xf32>
    %38 = arith.select %36, %23, %37 : vector<8x128xi1>, vector<8x128xf32>
    %cst_19 = arith.constant dense<0.000000e+00> : vector<8xf32>
    %39 = vector.multi_reduction <add>, %38, %cst_19 [1] : vector<8x128xf32> to vector<8xf32>
    %40 = vector.shape_cast %39 : vector<8xf32> to vector<8x1xf32>
    %41 = arith.subf %34, %40 : vector<8x1xf32>
    %42 = vector.broadcast %27 : vector<8x1xf32> to vector<8x128xf32>
    %43 = arith.cmpf oeq, %23, %42 : vector<8x128xf32>
    %c128_i32 = arith.constant 128 : i32
    %44 = vector.broadcast %c128_i32 : i32 to vector<8x128xi32>
    %45 = arith.select %43, %25, %44 : vector<8x128xi1>, vector<8x128xi32>
    %cst_20 = arith.constant dense<2147483647> : vector<8xi32>
    %46 = vector.multi_reduction <minsi>, %45, %cst_20 [1] : vector<8x128xi32> to vector<8xi32>
    %47 = vector.shape_cast %46 : vector<8xi32> to vector<8x1xi32>
    %48 = arith.sitofp %47 : vector<8x1xi32> to vector<8x1xf32>
    %c5_i32 = arith.constant 5 : i32
    %49 = vector.broadcast %c5_i32 : i32 to vector<8x128xi32>
    %50 = arith.cmpi eq, %25, %49 : vector<8x128xi32>
    %51 = vector.shape_cast %41 : vector<8x1xf32> to vector<8x1xf32>
    %52 = vector.broadcast %51 : vector<8x1xf32> to vector<8x128xf32>
    %53 = arith.select %50, %52, %23 : vector<8x128xi1>, vector<8x128xf32>
    %c6_i32 = arith.constant 6 : i32
    %54 = vector.broadcast %c6_i32 : i32 to vector<8x128xi32>
    %55 = arith.cmpi eq, %25, %54 : vector<8x128xi32>
    %56 = vector.shape_cast %48 : vector<8x1xf32> to vector<8x1xf32>
    %57 = vector.broadcast %56 : vector<8x1xf32> to vector<8x128xf32>
    %58 = arith.select %55, %57, %53 : vector<8x128xi1>, vector<8x128xf32>
    %c0_21 = arith.constant 0 : index
    %c0_22 = arith.constant 0 : index
    %59 = vector.load %arg8[%c0_21, %c0_22] : memref<8x128xf32, #tpu.memory_space<vmem>>, vector<8x128xf32>
    tpu.vector_store %arg8[%c0_21, %c0_22], %58 {strides = array<i32>} : memref<8x128xf32, #tpu.memory_space<vmem>>, vector<8x128xf32>,
    return
  }
  func.func @transform_0(%arg0: i32) -> (i32, i32) {
    %c0_i32 = arith.constant 0 : i32
    %c0_i32_0 = arith.constant 0 : i32
    return %arg0, %c0_i32 : i32, i32
  }
  func.func @transform_1(%arg0: i32) -> (i32, i32) {
    %c0_i32 = arith.constant 0 : i32
    %c0_i32_0 = arith.constant 0 : i32
    %c0_i32_1 = arith.constant 0 : i32
    return %c0_i32, %c0_i32_0 : i32, i32
  }
  func.func @transform_2(%arg0: i32) -> (i32, i32) {
    %c0_i32 = arith.constant 0 : i32
    %c0_i32_0 = arith.constant 0 : i32
    %c0_i32_1 = arith.constant 0 : i32
    return %c0_i32, %c0_i32_0 : i32, i32
  }
  func.func @transform_3(%arg0: i32) -> (i32, i32) {
    %c0_i32 = arith.constant 0 : i32
    %c0_i32_0 = arith.constant 0 : i32
    %c0_i32_1 = arith.constant 0 : i32
    return %c0_i32, %c0_i32_0 : i32, i32
  }
  func.func @transform_4(%arg0: i32) -> (i32, i32) {
    %c0_i32 = arith.constant 0 : i32
    %c0_i32_0 = arith.constant 0 : i32
    %c0_i32_1 = arith.constant 0 : i32
    return %c0_i32, %c0_i32_0 : i32, i32
  }
  func.func @transform_5(%arg0: i32) -> (i32, i32) {
    %c0_i32 = arith.constant 0 : i32
    %c0_i32_0 = arith.constant 0 : i32
    %c0_i32_1 = arith.constant 0 : i32
    return %c0_i32, %c0_i32_0 : i32, i32
  }
  func.func @transform_6(%arg0: i32) -> (i32, i32) {
    %c0_i32 = arith.constant 0 : i32
    %c0_i32_0 = arith.constant 0 : i32
    return %arg0, %c0_i32 : i32, i32
  }
  func.func @transform_7(%arg0: i32) -> (i32, i32) {
    %c0_i32 = arith.constant 0 : i32
    %c0_i32_0 = arith.constant 0 : i32
    return %arg0, %c0_i32 : i32, i32
  }
}

</mosaic_0001>

<llo_original>
// kernel: tpu_custom_call.1
$region0: #{tpu_custom_call.1}
  #allocation0 [shape = 'u32[]', space=smem, size = 0x4, offset = 0x4, fixed_abs, tag = 'smem constant byte address 0x4 - core index']
  #allocation1 [shape = 'u32[144,128]{1,0:T(1,128)}', space=vmem, size = 0x12000, scoped, tag = 'internal scratch']
  %s0 = inlined_call_operand.hbm [shape: bf16[256,128], index: 0, kind: input, shape index: {}]
  %s1 = inlined_call_operand.vmem [shape: bf16[128,24], index: 1, kind: input, shape index: {}]
  %s2 = inlined_call_operand.vmem [shape: f32[1,24], index: 2, kind: input, shape index: {}]
  %s3 = inlined_call_operand.vmem [shape: s32[1,24], index: 3, kind: input, shape index: {}]
  %s4 = inlined_call_operand.vmem [shape: bf16[24,128], index: 4, kind: input, shape index: {}]
  %s5 = inlined_call_operand.vmem [shape: f32[1,128], index: 5, kind: input, shape index: {}]
  %s6 = inlined_call_operand.vmem [shape: s32[16,1], index: 6, kind: input, shape index: {}]
  %s7 = inlined_call_operand.hbm [shape: f32[16,128], index: 7, kind: output, shape index: {}]
  %s8 = sld [smem:[#allocation0]]
  $region65: #{tpu_custom_call.1} parent=0
    _
  %s10 = ssub.s32 1, %s8
  %s11 = scalar_select 0, %s10, %s8
  $region1: #{tpu_custom_call.1} parent=0
    #allocation2 [shape = 'u8[65536]{0}', space=vmem, size = 0x10000, scoped, tag = 'input window, operand 0']
    #allocation3 [shape = 's32[2]{0}', space=sflag, size = 0x8, scoped, tag = 'scoped memory for tpu_custom_call.1']
    #allocation4 [shape = 's32[2]{0}', space=sflag, size = 0x8, scoped, tag = 'scoped memory for tpu_custom_call.1']
    #allocation5 [shape = 'u8[8192]{0}', space=vmem, size = 0x2000, scoped, tag = 'output window, operand 0']
    %12 = vsyncpa [#allocation3], 0
    %s13 = scalar_lea.sflag [#allocation3], 1
    %14 = vsyncpa %s13, 0
    %15 = vsyncpa [#allocation4], 0
    %s16 = scalar_lea.sflag [#allocation4], 1
    %17 = vsyncpa %s16, 0
    loop: start=0, step=1, limit=4
    $region2: #{tpu_custom_call.1} parent=1 // loop_pre_header
      _
    $region3: #{tpu_custom_call.1} parent=1 // loop_header
      %s19 = sphi 0, %s23
      %p20 = scmp.ge.s32.totalorder %s19, 4
      %s29 = sphi 0, %s31
      %s32 = sphi 0, %s29
      %s33 = sphi 0, %s32
      %s49 = sphi 0, %s33
      %s53 = sphi 0, %s53
      %s55 = sphi 0, %s53
      %s56 = sphi 0, %s55
      %s70 = sphi 0, %s56
      %s74 = sphi 0, %s74
      %s76 = sphi 0, %s74
      %s77 = sphi 0, %s76
      %s91 = sphi 0, %s77
      %s95 = sphi 0, %s95
      %s97 = sphi 0, %s95
      %s98 = sphi 0, %s97
      %s112 = sphi 0, %s98
      %s116 = sphi 0, %s116
      %s118 = sphi 0, %s116
      %s119 = sphi 0, %s118
      %s133 = sphi 0, %s119
      %s137 = sphi 0, %s137
      %s139 = sphi 0, %s137
      %s140 = sphi 0, %s139
      %s154 = sphi 0, %s140
      %s160 = sphi 0, %s162
      %s163 = sphi 0, %s160
      %s164 = sphi 0, %s163
      %s180 = sphi 0, %s164
      %s186 = sphi 0, %s188
      %s189 = sphi 0, %s186
      %s190 = sphi 0, %s189
      %s206 = sphi 0, %s190
    $region4: #{tpu_custom_call.1} parent=1 // loop_header_branch
      %22 = sbr.rel (%p20) target = $region8
    $region5: #{tpu_custom_call.1} parent=1 // loop_body
      %s24 = ssub.s32 %s19, 1
      %s25 = ssub.s32 %s19, 2
      %s26 = sadd.s32 %s19, 1
      %s27 = ssub.s32 %s19, %s26
      %p28 = scmp.eq.s32.totalorder %s27, 0
      %s30 = sadd.s32 %s29, 1
      %s31 = scalar_select %p28, %s29, %s30
      %p34 = pneg %p28
      %p35 = scmp.eq.s32.totalorder %s19, 1
      %p36 = por %p34, %p35
      %p37 = scmp.ne.s32.totalorder %s29, %s32
      %p38 = scmp.eq.s32.totalorder %s19, 0
      %p39 = por %p37, %p38
      %p40 = scmp.ne.s32.totalorder %s29, %s32
      %p41 = scmp.eq.s32.totalorder %s24, 1
      %p42 = por %p40, %p41
      %p43 = scmp.ne.s32.totalorder %s32, %s33
      %p44 = scmp.eq.s32.totalorder %s24, 0
      %p45 = por %p43, %p44
      %p46 = scmp.ne.s32.totalorder %s32, %s33
      %p47 = scmp.eq.s32.totalorder %s25, 1
      %p48 = por %p46, %p47
      %p50 = scmp.ne.s32.totalorder %s33, %s49
      %p51 = scmp.eq.s32.totalorder %s25, 0
      %p52 = por %p50, %p51
      %s54 = sadd.s32 %s53, 1
      %p57 = scmp.eq.s32.totalorder %s19, 1
      %p58 = scmp.ne.s32.totalorder %s53, %s55
      %p59 = scmp.eq.s32.totalorder %s19, 0
      %p60 = por %p58, %p59
      %p61 = scmp.ne.s32.totalorder %s53, %s55
      %p62 = scmp.eq.s32.totalorder %s24, 1
      %p63 = por %p61, %p62
      %p64 = scmp.ne.s32.totalorder %s55, %s56
      %p65 = scmp.eq.s32.totalorder %s24, 0
      %p66 = por %p64, %p65
      %p67 = scmp.ne.s32.totalorder %s55, %s56
      %p68 = scmp.eq.s32.totalorder %s25, 1
      %p69 = por %p67, %p68
      %p71 = scmp.ne.s32.totalorder %s56, %s70
      %p72 = scmp.eq.s32.totalorder %s25, 0
      %p73 = por %p71, %p72
      %s75 = sadd.s32 %s74, 1
      %p78 = scmp.eq.s32.totalorder %s19, 1
      %p79 = scmp.ne.s32.totalorder %s74, %s76
      %p80 = scmp.eq.s32.totalorder %s19, 0
      %p81 = por %p79, %p80
      %p82 = scmp.ne.s32.totalorder %s74, %s76
      %p83 = scmp.eq.s32.totalorder %s24, 1
      %p84 = por %p82, %p83
      %p85 = scmp.ne.s32.totalorder %s76, %s77
      %p86 = scmp.eq.s32.totalorder %s24, 0
      %p87 = por %p85, %p86
      %p88 = scmp.ne.s32.totalorder %s76, %s77
      %p89 = scmp.eq.s32.totalorder %s25, 1
      %p90 = por %p88, %p89
      %p92 = scmp.ne.s32.totalorder %s77, %s91
      %p93 = scmp.eq.s32.totalorder %s25, 0
      %p94 = por %p92, %p93
      %s96 = sadd.s32 %s95, 1
      %p99 = scmp.eq.s32.totalorder %s19, 1
      %p100 = scmp.ne.s32.totalorder %s95, %s97
      %p101 = scmp.eq.s32.totalorder %s19, 0
      %p102 = por %p100, %p101
      %p103 = scmp.ne.s32.totalorder %s95, %s97
      %p104 = scmp.eq.s32.totalorder %s24, 1
      %p105 = por %p103, %p104
      %p106 = scmp.ne.s32.totalorder %s97, %s98
      %p107 = scmp.eq.s32.totalorder %s24, 0
      %p108 = por %p106, %p107
      %p109 = scmp.ne.s32.totalorder %s97, %s98
      %p110 = scmp.eq.s32.totalorder %s25, 1
      %p111 = por %p109, %p110
      %p113 = scmp.ne.s32.totalorder %s98, %s112
      %p114 = scmp.eq.s32.totalorder %s25, 0
      %p115 = por %p113, %p114
      %s117 = sadd.s32 %s116, 1
      %p120 = scmp.eq.s32.totalorder %s19, 1
      %p121 = scmp.ne.s32.totalorder %s116, %s118
      %p122 = scmp.eq.s32.totalorder %s19, 0
      %p123 = por %p121, %p122
      %p124 = scmp.ne.s32.totalorder %s116, %s118
      %p125 = scmp.eq.s32.totalorder %s24, 1
      %p126 = por %p124, %p125
      %p127 = scmp.ne.s32.totalorder %s118, %s119
      %p128 = scmp.eq.s32.totalorder %s24, 0
      %p129 = por %p127, %p128
      %p130 = scmp.ne.s32.totalorder %s118, %s119
      %p131 = scmp.eq.s32.totalorder %s25, 1
      %p132 = por %p130, %p131
      %p134 = scmp.ne.s32.totalorder %s119, %s133
      %p135 = scmp.eq.s32.totalorder %s25, 0
      %p136 = por %p134, %p135
      %s138 = sadd.s32 %s137, 1
      %p141 = scmp.eq.s32.totalorder %s19, 1
      %p142 = scmp.ne.s32.totalorder %s137, %s139
      %p143 = scmp.eq.s32.totalorder %s19, 0
      %p144 = por %p142, %p143
      %p145 = scmp.ne.s32.totalorder %s137, %s139
      %p146 = scmp.eq.s32.totalorder %s24, 1
      %p147 = por %p145, %p146
      %p148 = scmp.ne.s32.totalorder %s139, %s140
      %p149 = scmp.eq.s32.totalorder %s24, 0
      %p150 = por %p148, %p149
      %p151 = scmp.ne.s32.totalorder %s139, %s140
      %p152 = scmp.eq.s32.totalorder %s25, 1
      %p153 = por %p151, %p152
      %p155 = scmp.ne.s32.totalorder %s140, %s154
      %p156 = scmp.eq.s32.totalorder %s25, 0
      %p157 = por %p155, %p156
      %s158 = ssub.s32 %s19, %s26
      %p159 = scmp.eq.s32.totalorder %s158, 0
      %s161 = sadd.s32 %s160, 1
      %s162 = scalar_select %p159, %s160, %s161
      %p165 = pneg %p159
      %p166 = scmp.eq.s32.totalorder %s19, 1
      %p167 = por %p165, %p166
      %p168 = scmp.ne.s32.totalorder %s160, %s163
      %p169 = scmp.eq.s32.totalorder %s19, 0
      %p170 = por %p168, %p169
      %p171 = scmp.ne.s32.totalorder %s160, %s163
      %p172 = scmp.eq.s32.totalorder %s24, 1
      %p173 = por %p171, %p172
      %p174 = scmp.ne.s32.totalorder %s163, %s164
      %p175 = scmp.eq.s32.totalorder %s24, 0
      %p176 = por %p174, %p175
      %p177 = scmp.ne.s32.totalorder %s163, %s164
      %p178 = scmp.eq.s32.totalorder %s25, 1
      %p179 = por %p177, %p178
      %p181 = scmp.ne.s32.totalorder %s164, %s180
      %p182 = scmp.eq.s32.totalorder %s25, 0
      %p183 = por %p181, %p182
      %s184 = ssub.s32 %s19, %s26
      %p185 = scmp.eq.s32.totalorder %s184, 0
      %s187 = sadd.s32 %s186, 1
      %s188 = scalar_select %p185, %s186, %s187
      %p191 = pneg %p185
      %p192 = scmp.eq.s32.totalorder %s19, 1
      %p193 = por %p191, %p192
      %p194 = scmp.ne.s32.totalorder %s186, %s189
      %p195 = scmp.eq.s32.totalorder %s19, 0
      %p196 = por %p194, %p195
      %p197 = scmp.ne.s32.totalorder %s186, %s189
      %p198 = scmp.eq.s32.totalorder %s24, 1
      %p199 = por %p197, %p198
      %p200 = scmp.ne.s32.totalorder %s189, %s190
      %p201 = scmp.eq.s32.totalorder %s24, 0
      %p202 = por %p200, %p201
      %p203 = scmp.ne.s32.totalorder %s189, %s190
      %p204 = scmp.eq.s32.totalorder %s25, 1
      %p205 = por %p203, %p204
      %p207 = scmp.ne.s32.totalorder %s190, %s206
      %p208 = scmp.eq.s32.totalorder %s25, 0
      %p209 = por %p207, %p208
      %p210 = scmp.le.s32.totalorder 1, %s19
      %p211 = scmp.lt.s32.totalorder %s19, 3
      %p212 = pnand %p210, %p211
      %p213 = pneg %p212
      // Predicated region
      $region9: #{tpu_custom_call.1} parent=5 // pred_check
        _
      $region10: #{tpu_custom_call.1} parent=5 // pred_check_branch
        %215 = sbr.rel (%p212) target = $region12
      $region11: #{tpu_custom_call.1} parent=5 // pred_region
        %s216 = ssub.s32 %s19, 1
        // Predicated region
        $region13: #{tpu_custom_call.1} parent=11 // pred_check
          %p217 = pneg %p66
        $region14: #{tpu_custom_call.1} parent=11 // pred_check_branch
          %219 = sbr.rel (%p217) target = $region16
        $region15: #{tpu_custom_call.1} parent=11 // pred_region
          _
        $region16: #{tpu_custom_call.1} parent=11 // pred_fallthru
          _
        // Predicated region
        $region17: #{tpu_custom_call.1} parent=11 // pred_check
          %p220 = pneg %p87
        $region18: #{tpu_custom_call.1} parent=11 // pred_check_branch
          %222 = sbr.rel (%p220) target = $region20
        $region19: #{tpu_custom_call.1} parent=11 // pred_region
          _
        $region20: #{tpu_custom_call.1} parent=11 // pred_fallthru
          _
        // Predicated region
        $region21: #{tpu_custom_call.1} parent=11 // pred_check
          %p223 = pneg %p108
        $region22: #{tpu_custom_call.1} parent=11 // pred_check_branch
          %225 = sbr.rel (%p223) target = $region24
        $region23: #{tpu_custom_call.1} parent=11 // pred_region
          _
        $region24: #{tpu_custom_call.1} parent=11 // pred_fallthru
          _
        // Predicated region
        $region25: #{tpu_custom_call.1} parent=11 // pred_check
          %p226 = pneg %p129
        $region26: #{tpu_custom_call.1} parent=11 // pred_check_branch
          %228 = sbr.rel (%p226) target = $region28
        $region27: #{tpu_custom_call.1} parent=11 // pred_region
          _
        $region28: #{tpu_custom_call.1} parent=11 // pred_fallthru
          _
        // Predicated region
        $region29: #{tpu_custom_call.1} parent=11 // pred_check
          %p229 = pneg %p150
        $region30: #{tpu_custom_call.1} parent=11 // pred_check_branch
          %231 = sbr.rel (%p229) target = $region32
        $region31: #{tpu_custom_call.1} parent=11 // pred_region
          _
        $region32: #{tpu_custom_call.1} parent=11 // pred_fallthru
          _
      $region12: #{tpu_custom_call.1} parent=5 // pred_fallthru
        _
      %p232 = scmp.lt.s32.totalorder %s19, 2
      // Predicated region
      $region33: #{tpu_custom_call.1} parent=5 // pred_check
        %p233 = pneg %p232
      $region34: #{tpu_custom_call.1} parent=5 // pred_check_branch
        %235 = sbr.rel (%p233) target = $region36
      $region35: #{tpu_custom_call.1} parent=5 // pred_region
        // Predicated region
        $region37: #{tpu_custom_call.1} parent=35 // pred_check
          %p236 = pneg %p39
        $region38: #{tpu_custom_call.1} parent=35 // pred_check_branch
          %238 = sbr.rel (%p236) target = $region40
        $region39: #{tpu_custom_call.1} parent=35 // pred_region
          %s239 = sand.u32 %s29, 1
          %s240 = scalar_lea.sflag [#allocation3], %s239
          %s241 = sand.u32 %s29, 1
          %s242 = smul.addr %s241, 64
          %s243 = scalar_lea.vmem [#allocation2], %s242
          %s244 = smul.u32 16, %s19
          %s246 = ssub.s32 1024, 1024
          %247 = vsyncadd %s240, %s246
          %s248 = smul.addr %s244, 64
          %s249 = scalar_lea.hbm %s0, %s248
          %s250 = sshll.u32 %s243, 4
          %s251 = int_to_ptr.vmem [resolvable:$true] %s250
          %256 = dma.hbm_to_vmem [thread:$0]  %s249, 1024, %s251, %s240, 64, 64, 4
        $region40: #{tpu_custom_call.1} parent=35 // pred_fallthru
          _
        // Predicated region
        $region41: #{tpu_custom_call.1} parent=35 // pred_check
          %p257 = pneg %p170
        $region42: #{tpu_custom_call.1} parent=35 // pred_check_branch
          %259 = sbr.rel (%p257) target = $region44
        $region43: #{tpu_custom_call.1} parent=35 // pred_region
          %p260 = scmp.lt.s32.totalorder %s19, 1
          %s261 = scalar_select %p260, %s19, 1
          %s262 = smul.addr %s261, 8
          %s263 = scalar_lea.vmem %s6, %s262
        $region44: #{tpu_custom_call.1} parent=35 // pred_fallthru
          _
      $region36: #{tpu_custom_call.1} parent=5 // pred_fallthru
        _
      %p264 = scmp.le.s32.totalorder 1, %s19
      %p265 = scmp.lt.s32.totalorder %s19, 3
      %p266 = pnand %p264, %p265
      %p267 = pneg %p266
      // Predicated region
      $region45: #{tpu_custom_call.1} parent=5 // pred_check
        _
      $region46: #{tpu_custom_call.1} parent=5 // pred_check_branch
        %269 = sbr.rel (%p266) target = $region48
      $region47: #{tpu_custom_call.1} parent=5 // pred_region
        %s270 = ssub.s32 %s19, 1
        %s271 = sand.u32 %s32, 1
        %s272 = scalar_lea.sflag [#allocation3], %s271
        %s273 = sand.u32 %s32, 1
        %s274 = smul.addr %s273, 64
        %s275 = scalar_lea.vmem [#allocation2], %s274
        // Predicated region
        $region49: #{tpu_custom_call.1} parent=47 // pred_check
          %p276 = pneg %p45
        $region50: #{tpu_custom_call.1} parent=47 // pred_check_branch
          %278 = sbr.rel (%p276) target = $region52
        $region51: #{tpu_custom_call.1} parent=47 // pred_region
          %279 = dma.done %s272, 1024
        $region52: #{tpu_custom_call.1} parent=47 // pred_fallthru
          _
        %s280 = sand.u32 %s32, 1
        %s281 = scalar_lea.sflag [#allocation3], %s280
        %s282 = sand.u32 %s32, 1
        %s283 = smul.addr %s282, 64
        %s284 = scalar_lea.vmem [#allocation2], %s283
        %p285 = pneg %p45
        %p286 = pneg %p42
        %p287 = pneg %p66
        %p288 = pneg %p63
        %p289 = pneg %p87
        %p290 = pneg %p84
        %p291 = pneg %p108
        %p292 = pneg %p105
        %p293 = pneg %p129
        %p294 = pneg %p126
        %p295 = pneg %p150
        %p296 = pneg %p147
        %p297 = scmp.lt.s32.totalorder %s24, 1
        %s298 = scalar_select %p297, %s24, 1
        %s299 = smul.addr %s298, 8
        %s300 = scalar_lea.vmem %s6, %s299
        %p301 = pneg %p176
        %p302 = pneg %p173
        %p303 = pneg %p202
        %p304 = pneg %p199
        %s305 = sand.u32 %s189, 1
        %s306 = scalar_lea.sflag [#allocation4], %s305
        %s307 = sand.u32 %s189, 1
        %s308 = smul.addr %s307, 8
        %s309 = scalar_lea.vmem [#allocation5], %s308
        %s310 = smul.u32 16, %s24
        %p311 = scmp.lt.s32.totalorder %s24, 1
        %s312 = scalar_select %p311, %s24, 1
        %s313 = smul.addr %s312, 8
        %s314 = scalar_lea.vmem %s6, %s313
        %v316 = vld [vmem:[%s275] sm:$0xf]
        %v317 = vld [vmem:[%s275 + $0x4] sm:$0xf]
        %v318 = vld [vmem:[%s275 + $0x8] sm:$0xf]
        %v319 = vld [vmem:[%s275 + $0xc] sm:$0xf]
        %v320 = vld [vmem:[%s275 + $0x10] sm:$0xf]
        %v321 = vld [vmem:[%s275 + $0x14] sm:$0xf]
        %v322 = vld [vmem:[%s275 + $0x18] sm:$0xf]
        %v323 = vld [vmem:[%s275 + $0x1c] sm:$0xf]
        %v324 = vld [vmem:[%s275 + $0x20] sm:$0xf]
        %v325 = vld [vmem:[%s275 + $0x24] sm:$0xf]
        %v326 = vld [vmem:[%s275 + $0x28] sm:$0xf]
        %v327 = vld [vmem:[%s275 + $0x2c] sm:$0xf]
        %v328 = vld [vmem:[%s275 + $0x30] sm:$0xf]
        %v329 = vld [vmem:[%s275 + $0x34] sm:$0xf]
        %v330 = vld [vmem:[%s275 + $0x38] sm:$0xf]
        %v331 = vld [vmem:[%s275 + $0x3c] sm:$0xf]
        %v332 = vld [vmem:[%s1] sm:$0xf]
        %v333 = vld [vmem:[%s1 + $0x4] sm:$0xf]
        %v334 = vld [vmem:[%s1 + $0x8] sm:$0xf]
        %v335 = vld [vmem:[%s1 + $0xc] sm:$0xf]
        %v336 = vld [vmem:[%s1 + $0x10] sm:$0xf]
        %v337 = vld [vmem:[%s1 + $0x14] sm:$0xf]
        %v338 = vld [vmem:[%s1 + $0x18] sm:$0xf]
        %v339 = vld [vmem:[%s1 + $0x1c] sm:$0xf]
        %v340 = vld [vmem:[%s1 + $0x20] sm:$0xf]
        %v341 = vld [vmem:[%s1 + $0x24] sm:$0xf]
        %v342 = vld [vmem:[%s1 + $0x28] sm:$0xf]
        %v343 = vld [vmem:[%s1 + $0x2c] sm:$0xf]
        %v344 = vld [vmem:[%s1 + $0x30] sm:$0xf]
        %v345 = vld [vmem:[%s1 + $0x34] sm:$0xf]
        %v346 = vld [vmem:[%s1 + $0x38] sm:$0xf]
        %v347 = vld [vmem:[%s1 + $0x3c] sm:$0xf]
        %v348 = vld [vmem:[%s2] sm:$0x1]
        %v350 = vlaneseq
        %v351 = vshrl.u32 %v350, 7
        %v352 = vsub.s32 0, %v351
        %v353 = vrot.slane %v348, %v352
        %v371 = vunpack.c.l.b16 %v316
        %v372 = vunpack.c.l.b16 %v317
        %v373 = vunpack.c.l.b16 %v318
        %v374 = vunpack.c.l.b16 %v319
        %v375 = vunpack.c.l.b16 %v320
        %v376 = vunpack.c.l.b16 %v321
        %v377 = vunpack.c.l.b16 %v322
        %v378 = vunpack.c.l.b16 %v323
        %v379 = vunpack.c.l.b16 %v324
        %v380 = vunpack.c.l.b16 %v325
        %v381 = vunpack.c.l.b16 %v326
        %v382 = vunpack.c.l.b16 %v327
        %v383 = vunpack.c.l.b16 %v328
        %v384 = vunpack.c.l.b16 %v329
        %v385 = vunpack.c.l.b16 %v330
        %v386 = vunpack.c.l.b16 %v331
        %v387 = vpack.c.b16 %v372, %v371
        %v388 = vpack.c.b16 %v374, %v373
        %v389 = vpack.c.b16 %v376, %v375
        %v390 = vpack.c.b16 %v378, %v377
        %v391 = vpack.c.b16 %v380, %v379
        %v392 = vpack.c.b16 %v382, %v381
        %v393 = vpack.c.b16 %v384, %v383
        %v394 = vpack.c.b16 %v386, %v385
        %v419 = vunpack.c.l.b16 %v332
        %v420 = vunpack.c.l.b16 %v333
        %v421 = vunpack.c.l.b16 %v334
        %v422 = vunpack.c.l.b16 %v335
        %v423 = vunpack.c.l.b16 %v336
        %v424 = vunpack.c.l.b16 %v337
        %v425 = vunpack.c.l.b16 %v338
        %v426 = vunpack.c.l.b16 %v339
        %v427 = vunpack.c.l.b16 %v340
        %v428 = vunpack.c.l.b16 %v341
        %v429 = vunpack.c.l.b16 %v342
        %v430 = vunpack.c.l.b16 %v343
        %v431 = vunpack.c.l.b16 %v344
        %v432 = vunpack.c.l.b16 %v345
        %v433 = vunpack.c.l.b16 %v346
        %v434 = vunpack.c.l.b16 %v347
        %v435 = vpack.c.b16 %v420, %v419
        %v436 = vpack.c.b16 %v422, %v421
        %v437 = vpack.c.b16 %v424, %v423
        %v438 = vpack.c.b16 %v426, %v425
        %v439 = vpack.c.b16 %v428, %v427
        %v440 = vpack.c.b16 %v430, %v429
        %v441 = vpack.c.b16 %v432, %v431
        %v442 = vpack.c.b16 %v434, %v433
        %451 = vmatprep.subr.bf16.mxu0 0
        %452 = vmatpush1.bf16.msra.mxu0 %v442
        %453 = vmatprep.subr.bf16.mxu0 0
        %454 = vmatpush1.bf16.msra.mxu0 %v441
        %455 = vmatprep.subr.bf16.mxu0 0
        %456 = vmatpush1.bf16.msra.mxu0 %v440
        %457 = vmatprep.subr.bf16.mxu0 0
        %458 = vmatpush1.bf16.msra.mxu0 %v439
        %459 = vmatprep.subr.bf16.mxu0 0
        %460 = vmatpush1.bf16.msra.mxu0 %v438
        %461 = vmatprep.subr.bf16.mxu0 0
        %462 = vmatpush1.bf16.msra.mxu0 %v437
        %463 = vmatprep.subr.bf16.mxu0 0
        %464 = vmatpush1.bf16.msra.mxu0 %v436
        %465 = vmatprep.subr.bf16.mxu0 0
        %466 = vmatpush1.bf16.msra.mxu0 %v435
        %467 = vmatprep.subr.bf16.mxu0 0
        %468 = vmatpush2.bf16.msra.mxu0 0
        %469 = vmatprep.subr.bf16.mxu0 0
        %470 = vmatpush2.bf16.msra.mxu0 0
        %471 = vmatprep.subr.bf16.mxu0 0
        %472 = vmatpush2.bf16.msra.mxu0 0
        %473 = vmatprep.subr.bf16.mxu0 0
        %474 = vmatpush2.bf16.msra.mxu0 0
        %475 = vmatprep.subr.bf16.mxu0 0
        %476 = vmatpush2.bf16.msra.mxu0 0
        %477 = vmatprep.subr.bf16.mxu0 0
        %478 = vmatpush2.bf16.msra.mxu0 0
        %479 = vmatprep.subr.bf16.mxu0 0
        %480 = vmatpush2.bf16.msra.mxu0 0
        %481 = vmatprep.subr.bf16.mxu0 0
        %482 = vmatpush2.bf16.msra.mxu0 0
        %483 = vmatprep.mubr.bf16.mxu0 0
        %484 = vmatmul.mubr.bf16.gmra.mxu0 %v387
        %v485 = vpop.f32.mrf.mxu0
        %v486 = vadd.f32 %v353, %v485
        %v487 = vpop.f32.mrf.mxu0
        %v488 = vpop.f32.mrf.mxu0
        %v489 = vadd.f32 %v353, %v488
        %v490 = vpop.f32.mrf.mxu0
        %491 = vmatprep.mubr.bf16.mxu0 0
        %492 = vmatmul.mubr.bf16.gmra.mxu0 %v388
        %v493 = vpop.f32.mrf.mxu0
        %v494 = vadd.f32 %v353, %v493
        %v495 = vpop.f32.mrf.mxu0
        %v496 = vpop.f32.mrf.mxu0
        %v497 = vadd.f32 %v353, %v496
        %v498 = vpop.f32.mrf.mxu0
        %499 = vmatprep.mubr.bf16.mxu0 0
        %500 = vmatmul.mubr.bf16.gmra.mxu0 %v389
        %v501 = vpop.f32.mrf.mxu0
        %v502 = vadd.f32 %v353, %v501
        %v503 = vpop.f32.mrf.mxu0
        %v504 = vpop.f32.mrf.mxu0
        %v505 = vadd.f32 %v353, %v504
        %v506 = vpop.f32.mrf.mxu0
        %507 = vmatprep.mubr.bf16.mxu0 0
        %508 = vmatmul.mubr.bf16.gmra.mxu0 %v390
        %v509 = vpop.f32.mrf.mxu0
        %v510 = vadd.f32 %v353, %v509
        %v511 = vpop.f32.mrf.mxu0
        %v512 = vpop.f32.mrf.mxu0
        %v513 = vadd.f32 %v353, %v512
        %v514 = vpop.f32.mrf.mxu0
        %515 = vmatprep.mubr.bf16.mxu0 0
        %516 = vmatmul.mubr.bf16.gmra.mxu0 %v391
        %v517 = vpop.f32.mrf.mxu0
        %v518 = vadd.f32 %v353, %v517
        %v519 = vpop.f32.mrf.mxu0
        %v520 = vpop.f32.mrf.mxu0
        %v521 = vadd.f32 %v353, %v520
        %v522 = vpop.f32.mrf.mxu0
        %523 = vmatprep.mubr.bf16.mxu0 0
        %524 = vmatmul.mubr.bf16.gmra.mxu0 %v392
        %v525 = vpop.f32.mrf.mxu0
        %v526 = vadd.f32 %v353, %v525
        %v527 = vpop.f32.mrf.mxu0
        %v528 = vpop.f32.mrf.mxu0
        %v529 = vadd.f32 %v353, %v528
        %v530 = vpop.f32.mrf.mxu0
        %531 = vmatprep.mubr.bf16.mxu0 0
        %532 = vmatmul.mubr.bf16.gmra.mxu0 %v393
        %v533 = vpop.f32.mrf.mxu0
        %v534 = vadd.f32 %v353, %v533
        %v535 = vpop.f32.mrf.mxu0
        %v536 = vpop.f32.mrf.mxu0
        %v537 = vadd.f32 %v353, %v536
        %v538 = vpop.f32.mrf.mxu0
        %539 = vmatprep.mubr.bf16.mxu0 0
        %540 = vmatmul.mubr.bf16.gmra.mxu0 %v394
        %v541 = vpop.f32.mrf.mxu0
        %v542 = vadd.f32 %v353, %v541
        %v543 = vpop.f32.mrf.mxu0
        %v544 = vpop.f32.mrf.mxu0
        %v545 = vadd.f32 %v353, %v544
        %v546 = vpop.f32.mrf.mxu0
        %547 = vdwg.mxu0
        %v548 = vtanh.pop %v486
        %v549 = vtanh.pop %v489
        %v550 = vtanh.pop %v494
        %v551 = vtanh.pop %v497
        %v552 = vtanh.pop %v502
        %v553 = vtanh.pop %v505
        %v554 = vtanh.pop %v510
        %v555 = vtanh.pop %v513
        %v556 = vtanh.pop %v518
        %v557 = vtanh.pop %v521
        %v558 = vtanh.pop %v526
        %v559 = vtanh.pop %v529
        %v560 = vtanh.pop %v534
        %v561 = vtanh.pop %v537
        %v562 = vtanh.pop %v542
        %v563 = vtanh.pop %v545
        %v564 = vlaneseq
        %v565 = vshrl.u32 %v564, 7
        %v566 = vadd.s32 %v565, 8
        %v567 = vld [vmem:[%s3] sm:$0x1]
        %v568 = vlaneseq
        %v569 = vshrl.u32 %v568, 7
        %v570 = vsub.s32 0, %v569
        %v571 = vrot.slane %v567, %v570
        %vm572 = vcmp.lt.s32.totalorder %v565, %v571
        %vm573 = vcmp.lt.s32.totalorder %v566, %v571
        %v574 = vsel %vm572, 1, 0
        %v575 = vsel %vm573, 1, 0
        %vm576 = vcmp.eq.s32.totalorder %v574, 1
        %vm577 = vcmp.eq.s32.totalorder %v575, 1
        %v578 = vsel %vm576, %v548, -2.0
        %v579 = vsel %vm577, %v549, -2.0
        %v580 = vsel %vm576, %v550, -2.0
        %v581 = vsel %vm577, %v551, -2.0
        %v582 = vsel %vm576, %v552, -2.0
        %v583 = vsel %vm577, %v553, -2.0
        %v584 = vsel %vm576, %v554, -2.0
        %v585 = vsel %vm577, %v555, -2.0
        %v586 = vsel %vm576, %v556, -2.0
        %v587 = vsel %vm577, %v557, -2.0
        %v588 = vsel %vm576, %v558, -2.0
        %v589 = vsel %vm577, %v559, -2.0
        %v590 = vsel %vm576, %v560, -2.0
        %v591 = vsel %vm577, %v561, -2.0
        %v592 = vsel %vm576, %v562, -2.0
        %v593 = vsel %vm577, %v563, -2.0
        %vm594 = vcmask 195584
        %v595 = vsel %vm594, %v578, -inf
        %v596 = vsel %vm594, %v579, -inf
        %v597 = vmax.f32 %v595, %v596
        %v598 = vrot.slane %v597, 4
        %v599 = vmax.f32 %v597, %v598
        %v600 = vrot.slane %v599, 2
        %v601 = vmax.f32 %v599, %v600
        %v602 = vrot.slane %v601, 1
        %v603 = vmax.f32 %v601, %v602
        %v604 = vsel %vm594, %v580, -inf
        %v605 = vsel %vm594, %v581, -inf
        %v606 = vmax.f32 %v604, %v605
        %v607 = vrot.slane %v606, 4
        %v608 = vmax.f32 %v606, %v607
        %v609 = vrot.slane %v608, 2
        %v610 = vmax.f32 %v608, %v609
        %v611 = vrot.slane %v610, 1
        %v612 = vmax.f32 %v610, %v611
        %v613 = vsel %vm594, %v582, -inf
        %v614 = vsel %vm594, %v583, -inf
        %v615 = vmax.f32 %v613, %v614
        %v616 = vrot.slane %v615, 4
        %v617 = vmax.f32 %v615, %v616
        %v618 = vrot.slane %v617, 2
        %v619 = vmax.f32 %v617, %v618
        %v620 = vrot.slane %v619, 1
        %v621 = vmax.f32 %v619, %v620
        %v622 = vsel %vm594, %v584, -inf
        %v623 = vsel %vm594, %v585, -inf
        %v624 = vmax.f32 %v622, %v623
        %v625 = vrot.slane %v624, 4
        %v626 = vmax.f32 %v624, %v625
        %v627 = vrot.slane %v626, 2
        %v628 = vmax.f32 %v626, %v627
        %v629 = vrot.slane %v628, 1
        %v630 = vmax.f32 %v628, %v629
        %v631 = vsel %vm594, %v586, -inf
        %v632 = vsel %vm594, %v587, -inf
        %v633 = vmax.f32 %v631, %v632
        %v634 = vrot.slane %v633, 4
        %v635 = vmax.f32 %v633, %v634
        %v636 = vrot.slane %v635, 2
        %v637 = vmax.f32 %v635, %v636
        %v638 = vrot.slane %v637, 1
        %v639 = vmax.f32 %v637, %v638
        %v640 = vsel %vm594, %v588, -inf
        %v641 = vsel %vm594, %v589, -inf
        %v642 = vmax.f32 %v640, %v641
        %v643 = vrot.slane %v642, 4
        %v644 = vmax.f32 %v642, %v643
        %v645 = vrot.slane %v644, 2
        %v646 = vmax.f32 %v644, %v645
        %v647 = vrot.slane %v646, 1
        %v648 = vmax.f32 %v646, %v647
        %v649 = vsel %vm594, %v590, -inf
        %v650 = vsel %vm594, %v591, -inf
        %v651 = vmax.f32 %v649, %v650
        %v652 = vrot.slane %v651, 4
        %v653 = vmax.f32 %v651, %v652
        %v654 = vrot.slane %v653, 2
        %v655 = vmax.f32 %v653, %v654
        %v656 = vrot.slane %v655, 1
        %v657 = vmax.f32 %v655, %v656
        %v658 = vsel %vm594, %v592, -inf
        %v659 = vsel %vm594, %v593, -inf
        %v660 = vmax.f32 %v658, %v659
        %v661 = vrot.slane %v660, 4
        %v662 = vmax.f32 %v660, %v661
        %v663 = vrot.slane %v662, 2
        %v664 = vmax.f32 %v662, %v663
        %v665 = vrot.slane %v664, 1
        %v666 = vmax.f32 %v664, %v665
        %v667 = vpack.c.bf16 %v603, %v603
        %v668 = vpack.c.bf16 %v612, %v612
        %v669 = vpack.c.bf16 %v621, %v621
        %v670 = vpack.c.bf16 %v630, %v630
        %v671 = vpack.c.bf16 %v639, %v639
        %v672 = vpack.c.bf16 %v648, %v648
        %v673 = vpack.c.bf16 %v657, %v657
        %v674 = vpack.c.bf16 %v666, %v666
        %v675 = vld [vmem:[%s4] sm:$0xf]
        %v676 = vld [vmem:[%s4 + $0x4] sm:$0xf]
        %v677 = vld [vmem:[%s4 + $0x8] sm:$0xf]
        %v678 = vld [vmem:[%s5] sm:$0x1]
        %v680 = vlaneseq
        %v681 = vshrl.u32 %v680, 7
        %v682 = vsub.s32 0, %v681
        %v683 = vrot.slane %v678, %v682
        %v693 = vunpack.c.l.b16 %v667
        %v694 = vunpack.c.l.b16 %v668
        %v695 = vunpack.c.l.b16 %v669
        %v696 = vunpack.c.l.b16 %v670
        %v697 = vunpack.c.l.b16 %v671
        %v698 = vunpack.c.l.b16 %v672
        %v699 = vunpack.c.l.b16 %v673
        %v700 = vunpack.c.l.b16 %v674
        %vm701 = vcmask 1041409
        %v702 = vsel %vm701, %v694, %v693
        %vm703 = vcmask 1042434
        %v704 = vsel %vm703, %v695, %v702
        %vm705 = vcmask 1043459
        %v706 = vsel %vm705, %v696, %v704
        %vm707 = vcmask 1044484
        %v708 = vsel %vm707, %v697, %v706
        %vm709 = vcmask 1045509
        %v710 = vsel %vm709, %v698, %v708
        %vm711 = vcmask 1046534
        %v712 = vsel %vm711, %v699, %v710
        %vm713 = vcmask 1047559
        %v714 = vsel %vm713, %v700, %v712
        %v715 = vpack.c.b16 %v714, %v714
        %v719 = vunpack.c.l.b16 %v675
        %v720 = vunpack.c.l.b16 %v676
        %v721 = vunpack.c.l.b16 %v677
        %v722 = vpack.c.b16 %v720, %v719
        %v723 = vpack.c.b16 %v721, %v721
        %v726 = vsel %vm594, %v715, 0
        %vm728 = vcmask 1043456
        %v730 = vsel %vm728, %v723, 0
        %732 = vmatprep.subr.bf16.mxu0 0
        %733 = vmatpush1.bf16.msra.mxu0 0
        %734 = vmatprep.subr.bf16.mxu0 0
        %735 = vmatpush1.bf16.msra.mxu0 0
        %736 = vmatprep.subr.bf16.mxu0 0
        %737 = vmatpush1.bf16.msra.mxu0 0
        %738 = vmatprep.subr.bf16.mxu0 0
        %739 = vmatpush1.bf16.msra.mxu0 0
        %740 = vmatprep.subr.bf16.mxu0 0
        %741 = vmatpush1.bf16.msra.mxu0 0
        %742 = vmatprep.subr.bf16.mxu0 0
        %743 = vmatpush1.bf16.msra.mxu0 0
        %744 = vmatprep.subr.bf16.mxu0 0
        %745 = vmatpush1.bf16.msra.mxu0 %v730
        %746 = vmatprep.subr.bf16.mxu0 0
        %747 = vmatpush1.bf16.msra.mxu0 %v722
        %748 = vmatprep.subr.bf16.mxu0 0
        %749 = vmatpush2.bf16.msra.mxu0 0
        %750 = vmatprep.subr.bf16.mxu0 0
        %751 = vmatpush2.bf16.msra.mxu0 0
        %752 = vmatprep.subr.bf16.mxu0 0
        %753 = vmatpush2.bf16.msra.mxu0 0
        %754 = vmatprep.subr.bf16.mxu0 0
        %755 = vmatpush2.bf16.msra.mxu0 0
        %756 = vmatprep.subr.bf16.mxu0 0
        %757 = vmatpush2.bf16.msra.mxu0 0
        %758 = vmatprep.subr.bf16.mxu0 0
        %759 = vmatpush2.bf16.msra.mxu0 0
        %760 = vmatprep.subr.bf16.mxu0 0
        %761 = vmatpush2.bf16.msra.mxu0 0
        %762 = vmatprep.subr.bf16.mxu0 0
        %763 = vmatpush2.bf16.msra.mxu0 0
        %764 = vmatprep.mubr.bf16.mxu0 0
        %765 = vmatmul.mubr.bf16.gmra.mxu0 %v726
        %v766 = vpop.f32.mrf.mxu0
        %v767 = vadd.f32 %v683, %v766
        %v768 = vpop.f32.mrf.mxu0
        %v769 = vpop.f32.mrf.mxu0
        %v770 = vpop.f32.mrf.mxu0
        %771 = vdwg.mxu0
        %v772 = vld [vmem:[%s314] sm:$0xff]
        %v773 = vlaneseq
        %v774 = vand.u32 %v773, 127
        %775 = vmax.xlane.f32.xlu0 %v767
        %v776 = vpop.xlane.xlu0 %775
        %v777 = vsub.f32 %v767, %v776
        %v778 = vmul.f32 %v777, 1.442695
        %v779 = vpow.pop %v778
        %780 = vadd.xlane.f32.xlu0 %v779
        %v781 = vpop.xlane.xlu0 %780
        %v782 = vlog2.pop %v781
        %v783 = vmul.f32 %v782, 0.6931472
        %v784 = vadd.f32 %v783, %v776
        %785 = vset.pattern.permute.xlu0 0
        %786 = vperm.xlu0 %785, %v772
        %v787 = vpop.permute.xlu0 %786
        %vm788 = vcmp.eq.s32.totalorder %v774, %v787
        %v789 = vsel %vm788, %v767, 0.0
        %790 = vadd.xlane.f32.xlu0 %v789
        %v791 = vpop.xlane.xlu0 %790
        %v792 = vsub.f32 %v784, %v791
        %vm793 = vcmp.eq.f32.partialorder %v767, %v776
        %v794 = vsel %vm793, %v774, 128
        %v795 = vand.u32 %v794, 65535
        %v796 = vshra.s32 %v794, 16
        %v797 = vcvt.s32.f32 %v795
        %v798 = vcvt.s32.f32 %v796
        %799 = vmin.xlane.f32.xlu0 %v798
        %v800 = vpop.xlane.xlu0 %799
        %vm801 = vcmp.eq.f32.partialorder %v798, %v800
        %v802 = vsel %vm801, %v797, inf
        %803 = vmin.xlane.f32.xlu0 %v802
        %v804 = vpop.xlane.xlu0 %803
        %v805 = vcvt.f32.s32 %v804
        %v806 = vcvt.f32.s32 %v800
        %v807 = vshll.u32 %v806, 16
        %v808 = vadd.s32 %v807, %v805
        %v809 = vcvt.s32.f32 %v808
        %vm810 = vcmp.eq.s32.totalorder %v774, 5
        %v811 = vsel %vm810, %v792, %v767
        %vm812 = vcmp.eq.s32.totalorder %v774, 6
        %v813 = vsel %vm812, %v809, %v811
        %814 = vst [vmem:[%s309] sm:$0xff] %v813
        %s815 = sand.u32 %s189, 1
        %s816 = scalar_lea.sflag [#allocation4], %s815
        %s817 = sand.u32 %s189, 1
        %s818 = smul.addr %s817, 8
        %s819 = scalar_lea.vmem [#allocation5], %s818
        // Predicated region
        $region53: #{tpu_custom_call.1} parent=47 // pred_check
          %p820 = pneg %p199
        $region54: #{tpu_custom_call.1} parent=47 // pred_check_branch
          %822 = sbr.rel (%p820) target = $region56
        $region55: #{tpu_custom_call.1} parent=47 // pred_region
          %s824 = ssub.s32 128, 128
          %825 = vsyncadd %s816, %s824
          %s826 = smul.addr %s24, 128
          %s827 = scalar_lea.hbm %s7, %s826
          %s829 = sshll.u32 %s819, 4
          %s830 = int_to_ptr.vmem [resolvable:$true] %s829
          %832 = dma.vmem_to_hbm [thread:$0]  %s830, 128, %s827, %s816
        $region56: #{tpu_custom_call.1} parent=47 // pred_fallthru
          _
      $region48: #{tpu_custom_call.1} parent=5 // pred_fallthru
        _
      %p833 = scmp.le.s32.totalorder 2, %s19
      // Predicated region
      $region57: #{tpu_custom_call.1} parent=5 // pred_check
        %p834 = pneg %p833
      $region58: #{tpu_custom_call.1} parent=5 // pred_check_branch
        %836 = sbr.rel (%p834) target = $region60
      $region59: #{tpu_custom_call.1} parent=5 // pred_region
        %s837 = ssub.s32 %s19, 2
        // Predicated region
        $region61: #{tpu_custom_call.1} parent=59 // pred_check
          %p838 = pneg %p205
        $region62: #{tpu_custom_call.1} parent=59 // pred_check_branch
          %840 = sbr.rel (%p838) target = $region64
        $region63: #{tpu_custom_call.1} parent=59 // pred_region
          %s841 = sand.u32 %s190, 1
          %s842 = scalar_lea.sflag [#allocation4], %s841
          %s843 = sand.u32 %s190, 1
          %s844 = smul.addr %s843, 8
          %s845 = scalar_lea.vmem [#allocation5], %s844
          %846 = dma.done %s842, 128
        $region64: #{tpu_custom_call.1} parent=59 // pred_fallthru
          _
      $region60: #{tpu_custom_call.1} parent=5 // pred_fallthru
        _
    $region6: #{tpu_custom_call.1} parent=1 // loop_footer
      %s23 = sadd.s32 1, %s19
    $region7: #{tpu_custom_call.1} parent=1 // loop_footer_branch
      %18 = sbr.rel target = $region3
    $region8: #{tpu_custom_call.1} parent=1 // loop_exit
      _
    %847 = vsyncpa [#allocation3], 1
    %s848 = scalar_lea.sflag [#allocation3], 1
    %849 = vsyncpa %s848, 1
    %850 = vsyncpa [#allocation4], 1
    %s851 = scalar_lea.sflag [#allocation4], 1
    %852 = vsyncpa %s851, 1

</llo_original>
